<compile_context>
chip_gen: v5e
topology: v5e:2x2
jax: 0.10.0
libtpu: 0.0.40
codegen_flags: <defaults>
</compile_context>

<pallas_src>
import functools
import math
from typing import NamedTuple

import jax
import jax.numpy as jnp
from jax.experimental import pallas as pl
from jax.experimental.pallas import tpu as pltpu

VAR_CLAMP = 1e-30
LANES = 128
SUBLANES = 8
MIB = 1024 * 1024


def _round_up(n, m):
    return ((n + m - 1) // m) * m


def _vmem_capacity_bytes():
    """Physical VMEM of the attached TPU (conservative fallback = v7x 64 MiB)."""
    try:
        return int(pltpu.get_tpu_info().vmem_capacity_bytes)
    except Exception:
        return 64 * MIB


# ----------------------------------------------------------------------------
# SWAG state in kernel layout (built once; reused for every sample).
# ----------------------------------------------------------------------------
class SwagState(NamedTuple):
    mean_t: jnp.ndarray       # (total_rows, 128) f32
    sq_mean_t: jnp.ndarray    # (total_rows, 128) f32
    cov_t: jnp.ndarray        # (K, total_rows, 128) cov_dtype (bf16 by default)
    d: int                    # true flattened parameter count
    total_rows: int
    tile_rows: int
    vmem_limit_bytes: int


def prepare_swag_state(mean_flat, sq_mean_flat, cov_sqrt, *,
                       cov_dtype=jnp.bfloat16, tile_rows=None,
                       vmem_budget_bytes=None):
    """One-time conversion of the flattened SWAG buffers into the lane-dense
    tiled layout consumed by swag_sample_fullrank.  mean/sq_mean stay f32;
    cov_mat_sqrt is stored in cov_dtype (bf16 halves its HBM read traffic)."""
    (d,) = mean_flat.shape
    k, d2 = cov_sqrt.shape
    assert d2 == d and sq_mean_flat.shape == (d,)
    assert k >= 1  # TODO(synk): cov=False / mean-only sampling path not wired up.

    cov_itemsize = jnp.dtype(cov_dtype).itemsize
    # Sub-32-bit cov needs 16-row (packed-sublane) aligned second-minor tiles.
    row_align = 2 * SUBLANES if cov_itemsize < 4 else SUBLANES
    rows_needed = _round_up(pl.cdiv(d, LANES), row_align)

    cap = _vmem_capacity_bytes()
    if vmem_budget_bytes is None:
        # Big tiles on 128-MiB parts (v5e/v6e); leave headroom under v7x's
        # 64 MiB physical VMEM (compiler scratch comes out of the same pool).
        vmem_budget_bytes = 64 * MIB if cap >= 128 * MIB else 24 * MIB

    # Double-buffered working set per tile:
    #   2 * tile_rows * 128 * (4 f32 streams * 4B + K * cov_itemsize)
    bytes_per_row = LANES * (4 * 4 + k * cov_itemsize)
    if tile_rows is None:
        tile_rows = vmem_budget_bytes // (2 * bytes_per_row)
    tile_rows = max(row_align, (int(tile_rows) // row_align) * row_align)
    tile_rows = min(tile_rows, rows_needed)
    total_rows = _round_up(rows_needed, tile_rows)
    dp = total_rows * LANES

    work = 2 * tile_rows * bytes_per_row
    vmem_limit_bytes = min(work + 8 * MIB, cap - 8 * MIB)

    def tile_f32(v):
        return jnp.pad(v.astype(jnp.float32), (0, dp - d)).reshape(total_rows, LANES)

    mean_t = tile_f32(mean_flat)
    sq_mean_t = tile_f32(sq_mean_flat)
    cov_t = (jnp.pad(cov_sqrt, ((0, 0), (0, dp - d)))
             .astype(cov_dtype).reshape(k, total_rows, LANES))
    return SwagState(mean_t, sq_mean_t, cov_t, d, total_rows, tile_rows,
                     int(vmem_limit_bytes))


# ----------------------------------------------------------------------------
# Kernel 1: SWAG full-rank sampling over the flattened parameter vector.
#   mean/sq_mean/eps/out tiles: (tile_rows, 128) f32
#   cov tile:                   (K, tile_rows, 128) f32 or bf16
#   z (pre-scaled):             (K,) f32 resident in SMEM (scalar broadcasts)
# ----------------------------------------------------------------------------
def _swag_sample_kernel(z_ref, mean_ref, sq_mean_ref, eps_ref, cov_ref, out_ref,
                        *, scale, var_clamp, rank):
    mean = mean_ref[...]                                        # (TR, 128)
    var = jnp.maximum(sq_mean_ref[...] - mean * mean, var_clamp)
    out = mean + jnp.sqrt(var * scale) * eps_ref[...]           # diagonal part
    if rank > 0:
        # Low-rank part: sum_k z[k] * cov[k] — K scalar*vector FMAs on the VPU
        # (z scalars already carry scale_sqrt/sqrt(max_num_models-1); cov rows
        # stream through VMEM and are upcast to f32). K is small and static.
        acc = z_ref[0] * cov_ref[0].astype(jnp.float32)
        for k in range(1, rank):
            acc = acc + z_ref[k] * cov_ref[k].astype(jnp.float32)
        out = out + acc
    out_ref[...] = out


def swag_sample_fullrank(state: SwagState, eps_t, z, *, scale, max_num_models,
                         var_clamp=VAR_CLAMP):
    """SWAG full-rank sample (cov=True) over the flattened parameter vector.

    state  : SwagState from prepare_swag_state (layout done once, reused)
    eps_t  : (total_rows, 128) f32 standard normals (per-sample randomness)
    z      : (K,) f32 standard normals
    returns: (D,) f32 sampled flat parameter vector.
    """
    assert max_num_models >= 2, "SWAG full-rank sampling needs max_num_models >= 2"
    k = state.cov_t.shape[0]
    assert z.shape == (k,)
    assert eps_t.shape == (state.total_rows, LANES)

    # Fold scale_sqrt / sqrt(max_num_models - 1) into the K z scalars (host side,
    # K flops) so the kernel needs no extra per-vreg multiplies.
    z_scaled = z.astype(jnp.float32) * (
        float(scale) ** 0.5 / float(max_num_models - 1) ** 0.5)

    kernel = functools.partial(_swag_sample_kernel,
                               scale=float(scale),
                               var_clamp=float(var_clamp),
                               rank=k)

    grid = (state.total_rows // state.tile_rows,)
    tile_spec = pl.BlockSpec((state.tile_rows, LANES), lambda i: (i, 0))

    out_t = pl.pallas_call(
        kernel,
        out_shape=jax.ShapeDtypeStruct((state.total_rows, LANES), jnp.float32),
        grid=grid,
        in_specs=[
            pl.BlockSpec(memory_space=pltpu.MemorySpace.SMEM),          # z (K,)
            tile_spec,                                                  # mean
            tile_spec,                                                  # sq_mean
            tile_spec,                                                  # eps
            pl.BlockSpec((k, state.tile_rows, LANES), lambda i: (0, i, 0)),  # cov
        ],
        out_specs=tile_spec,
        compiler_params=pltpu.CompilerParams(
            dimension_semantics=("parallel",),
            vmem_limit_bytes=state.vmem_limit_bytes),
    )(z_scaled, state.mean_t, state.sq_mean_t, eps_t, state.cov_t)

    return out_t.reshape(state.total_rows * LANES)[:state.d]


# ----------------------------------------------------------------------------
# Kernel 2: tiled Linear (y = x @ w + b, optional fused ReLU), bf16 MXU path.
#   Grid (M, N, K) with K (contraction) last; f32 accumulator scratch.
# ----------------------------------------------------------------------------
def _linear_kernel(x_ref, w_ref, b_ref, o_ref, acc_ref, *, apply_relu):
    @pl.when(pl.program_id(2) == 0)
    def _init():
        acc_ref[...] = jnp.zeros_like(acc_ref)

    acc_ref[...] += jnp.dot(x_ref[...], w_ref[...],
                            preferred_element_type=jnp.float32)

    @pl.when(pl.program_id(2) == pl.num_programs(2) - 1)
    def _finalize():
        y = acc_ref[...] + b_ref[...]
        if apply_relu:
            y = jnp.maximum(y, 0.0)
        o_ref[...] = y.astype(o_ref.dtype)


def linear(x, w, b, *, apply_relu=False, out_dtype=jnp.float32,
           tm=256, tn=256, tk=512):
    """y = x @ w + b (optionally ReLU-fused). x:(M,K) w:(K,N) b:(N,).

    Operands are fed to the MXU as bf16 (f32 accumulation); padding to
    lane/sublane multiples keeps every load/store unmasked and is zero so the
    math is exact; the pad is sliced off outside the pallas_call.
    """
    m, kd = x.shape
    kd2, n = w.shape
    assert kd == kd2 and b.shape == (n,)

    xb = x.astype(jnp.bfloat16)
    wb = w.astype(jnp.bfloat16)
    bf = b.astype(jnp.float32).reshape(1, n)

    # bf16 operands: second-minor tile dims must be multiples of 16.
    m_p = _round_up(m, 16)
    tm = min(_round_up(tm, 16), m_p)
    m_p = _round_up(m_p, tm)

    k_p = _round_up(kd, LANES)
    tk = min(_round_up(tk, LANES), k_p)
    k_p = _round_up(k_p, tk)

    n_p = _round_up(n, LANES)
    tn = min(_round_up(tn, LANES), n_p)
    n_p = _round_up(n_p, tn)

    x_p = jnp.pad(xb, ((0, m_p - m), (0, k_p - kd)))
    w_p = jnp.pad(wb, ((0, k_p - kd), (0, n_p - n)))
    b_p = jnp.pad(bf, ((0, 0), (0, n_p - n)))

    y_p = pl.pallas_call(
        functools.partial(_linear_kernel, apply_relu=apply_relu),
        out_shape=jax.ShapeDtypeStruct((m_p, n_p), out_dtype),
        grid=(m_p // tm, n_p // tn, k_p // tk),
        in_specs=[
            pl.BlockSpec((tm, tk), lambda i, j, kk: (i, kk)),
            pl.BlockSpec((tk, tn), lambda i, j, kk: (kk, j)),
            pl.BlockSpec((1, tn), lambda i, j, kk: (0, j)),
        ],
        out_specs=pl.BlockSpec((tm, tn), lambda i, j, kk: (i, j)),
        scratch_shapes=[pltpu.VMEM((tm, tn), jnp.float32)],
        compiler_params=pltpu.CompilerParams(
            dimension_semantics=("parallel", "parallel", "arbitrary")),
    )(x_p, w_p, b_p)
    return y_p[:m, :n]


def mlp_forward(x, w1, b1, w2, b2):
    """y = relu(x @ w1 + b1) @ w2 + b2 with forward-layout weights
    (w1:(Din,H), w2:(H,Dout), i.e. torch W.T). Hidden activation is bf16 so the
    second matmul's LHS is already MXU-ready."""
    h = linear(x, w1, b1, apply_relu=True, out_dtype=jnp.bfloat16)
    return linear(h, w2, b2, apply_relu=False, out_dtype=jnp.float32)


# ----------------------------------------------------------------------------
# End-to-end demo with deterministic synthetic SWAG state.
# ----------------------------------------------------------------------------
if __name__ == "__main__":
    # Small MLP base: batch=8, in=32, hidden=64, out=16; SWAG rank K=8.
    B, DIN, HID, DOUT = 8, 32, 64, 16
    K = 8                      # cov_mat_rank == max_num_models
    MAX_NUM_MODELS = 8
    SCALE = 1.0

    # torch parameter order/layout: fc1.weight (H,Din), fc1.bias (H,),
    # fc2.weight (Dout,H), fc2.bias (Dout,)
    torch_shapes = [(HID, DIN), (HID,), (DOUT, HID), (DOUT,)]
    fwd_shapes = [(DIN, HID), (HID,), (HID, DOUT), (DOUT,)]   # forward layout
    sizes = [math.prod(s) for s in torch_shapes]
    D = sum(sizes)

    key = jax.random.PRNGKey(0)
    k_mean, k_var, k_cov, k_eps, k_z, k_x = jax.random.split(key, 6)

    # Deterministic synthetic SWAG buffers (what collect_model would have built),
    # flattened in torch parameter order/layout.
    mean_torch = 0.1 * jax.random.normal(k_mean, (D,), dtype=jnp.float32)
    true_var = 0.01 * jax.random.uniform(k_var, (D,), dtype=jnp.float32,
                                         minval=0.5, maxval=1.5)
    sq_mean_torch = mean_torch ** 2 + true_var
    cov_sqrt_torch = 0.05 * jax.random.normal(k_cov, (K, D), dtype=jnp.float32)

    # One-time layout transform: torch-layout flat -> forward-layout flat
    # (Linear weights transposed to (Din,H)/(H,Dout)) so the sampled vector
    # unflattens with reshape-only slices — no transposes between the kernels.
    def torch_flat_to_fwd_flat(v):
        pieces, offs = [], 0
        lead = v.shape[:-1]
        for shp, sz in zip(torch_shapes, sizes):
            p = v[..., offs:offs + sz]
            if len(shp) == 2:
                p = jnp.swapaxes(p.reshape(lead + shp), -1, -2).reshape(lead + (sz,))
            pieces.append(p)
            offs += sz
        return jnp.concatenate(pieces, axis=-1)

    mean_fwd = torch_flat_to_fwd_flat(mean_torch)
    sq_mean_fwd = torch_flat_to_fwd_flat(sq_mean_torch)
    cov_fwd = torch_flat_to_fwd_flat(cov_sqrt_torch)          # (K, D)

    # One-time tiled-layout state (reused for every subsequent sample).
    # tile_rows=16 forces a multi-step grid at these toy sizes so the D-tiled
    # pipeline is exercised; the default sizes the tile from the VMEM budget.
    state = prepare_swag_state(mean_fwd, sq_mean_fwd, cov_fwd,
                               cov_dtype=jnp.bfloat16, tile_rows=16)

    # Gaussian draws used by sample_fullrank (torch.randn_like / .normal_()),
    # generated directly in the tiled shape (no per-sample pad/reshape).
    eps_t = jax.random.normal(k_eps, (state.total_rows, LANES), dtype=jnp.float32)
    z = jax.random.normal(k_z, (K,), dtype=jnp.float32)

    # --- Pallas kernel 1: SWAG sample_fullrank (cov=True) ---
    sample_flat = swag_sample_fullrank(
        state, eps_t, z, scale=SCALE, max_num_models=MAX_NUM_MODELS)

    # Reshape-only unflatten into forward-layout params.
    offs, params = 0, []
    for shp in fwd_shapes:
        sz = math.prod(shp)
        params.append(sample_flat[offs:offs + sz].reshape(shp))
        offs += sz
    w1, b1, w2, b2 = params

    x = jax.random.normal(k_x, (B, DIN), dtype=jnp.float32)

    # --- Pallas kernel 2: SWAG.forward == base(x) with sampled params ---
    y = mlp_forward(x, w1, b1, w2, b2)
    y = jax.block_until_ready(y)

    # Pure-JAX reference. cov_mat_sqrt is intentionally stored in bf16 (storage
    # format choice), so the reference uses the bf16-rounded cov as well.
    eps_flat = eps_t.reshape(-1)[:D]
    var_ref = jnp.maximum(sq_mean_fwd - mean_fwd ** 2, VAR_CLAMP)
    cov_bf = cov_fwd.astype(jnp.bfloat16).astype(jnp.float32)
    rand_ref = (jnp.sqrt(var_ref) * eps_flat
                + (z @ cov_bf) / math.sqrt(MAX_NUM_MODELS - 1))
    sample_ref = mean_fwd + math.sqrt(SCALE) * rand_ref

    offs, pr = 0, []
    for shp in fwd_shapes:
        sz = math.prod(shp)
        pr.append(sample_ref[offs:offs + sz].reshape(shp))
        offs += sz
    h_ref = jnp.maximum(x @ pr[0] + pr[1], 0.0)
    y_ref = h_ref @ pr[2] + pr[3]

    assert jnp.allclose(sample_flat, sample_ref, atol=1e-5, rtol=1e-5)
    # Forward uses bf16 MXU operands (f32 accumulation): loosened tolerance.
    assert jnp.allclose(y, y_ref, atol=5e-2, rtol=5e-2)

    # TODO(synk): gpytorch-based log-likelihood methods (compute_logprob,
    # block_logdet, full_logll, ...) rely on lazy-tensor CG solves and are not
    # part of forward(); they are not translated. collect_model is host-side
    # running-average bookkeeping and stays outside the kernels.
    print("KERNEL_OK")
</pallas_src>

<mosaic_0001>
module attributes {stable_mosaic.version = 11 : i64} {
  func.func @_swag_sample_kernel(%arg0: i32, %arg1: memref<8xf32, #tpu.memory_space<smem>>, %arg2: memref<16x128xf32, #tpu.memory_space<vmem>>, %arg3: memref<16x128xf32, #tpu.memory_space<vmem>>, %arg4: memref<16x128xf32, #tpu.memory_space<vmem>>, %arg5: memref<8x16x128xbf16, #tpu.memory_space<vmem>>, %arg6: memref<16x128xf32, #tpu.memory_space<vmem>>) attributes {dimension_semantics = [#tpu.dimension_semantics<parallel>], iteration_bounds = array<i64: 2>, scalar_prefetch = 0 : i64, scratch_operands = 0 : i64, tpu.core_type = #tpu.core_type<tc>, window_params = [{transform_indices = @transform_0, window_bounds = array<i64: 8>}, {transform_indices = @transform_1, window_bounds = array<i64: 16, 128>}, {transform_indices = @transform_2, window_bounds = array<i64: 16, 128>}, {transform_indices = @transform_3, window_bounds = array<i64: 16, 128>}, {transform_indices = @transform_4, window_bounds = array<i64: 8, 16, 128>}, {transform_indices = @transform_5, window_bounds = array<i64: 16, 128>}]} {
    %c0 = arith.constant 0 : index
    %c0_0 = arith.constant 0 : index
    %0 = vector.load %arg2[%c0, %c0_0] : memref<16x128xf32, #tpu.memory_space<vmem>>, vector<16x128xf32>
    %c0_1 = arith.constant 0 : index
    %c0_2 = arith.constant 0 : index
    %1 = vector.load %arg3[%c0_1, %c0_2] : memref<16x128xf32, #tpu.memory_space<vmem>>, vector<16x128xf32>
    %2 = arith.mulf %0, %0 : vector<16x128xf32>
    %3 = arith.subf %1, %2 : vector<16x128xf32>
    %cst = arith.constant 1.000000e-30 : f32
    %4 = vector.broadcast %cst : f32 to vector<16x128xf32>
    %5 = arith.maximumf %3, %4 : vector<16x128xf32>
    %cst_3 = arith.constant 1.000000e+00 : f32
    %6 = vector.broadcast %cst_3 : f32 to vector<16x128xf32>
    %7 = arith.mulf %5, %6 : vector<16x128xf32>
    %8 = math.sqrt %7 : vector<16x128xf32>
    %c0_4 = arith.constant 0 : index
    %c0_5 = arith.constant 0 : index
    %9 = vector.load %arg4[%c0_4, %c0_5] : memref<16x128xf32, #tpu.memory_space<vmem>>, vector<16x128xf32>
    %10 = arith.mulf %8, %9 : vector<16x128xf32>
    %11 = arith.addf %0, %10 : vector<16x128xf32>
    %c0_6 = arith.constant 0 : index
    %12 = memref.load %arg1[%c0_6] : memref<8xf32, #tpu.memory_space<smem>>
    %c0_7 = arith.constant 0 : index
    %c0_8 = arith.constant 0 : index
    %c0_9 = arith.constant 0 : index
    %13 = vector.load %arg5[%c0_7, %c0_8, %c0_9] : memref<8x16x128xbf16, #tpu.memory_space<vmem>>, vector<1x16x128xbf16>
    %14 = vector.shape_cast %13 : vector<1x16x128xbf16> to vector<16x128xbf16>
    %15 = arith.extf %14 : vector<16x128xbf16> to vector<16x128xf32>
    %16 = vector.broadcast %12 : f32 to vector<16x128xf32>
    %17 = arith.mulf %16, %15 : vector<16x128xf32>
    %c1 = arith.constant 1 : index
    %18 = memref.load %arg1[%c1] : memref<8xf32, #tpu.memory_space<smem>>
    %c1_10 = arith.constant 1 : index
    %c0_11 = arith.constant 0 : index
    %c0_12 = arith.constant 0 : index
    %19 = vector.load %arg5[%c1_10, %c0_11, %c0_12] : memref<8x16x128xbf16, #tpu.memory_space<vmem>>, vector<1x16x128xbf16>
    %20 = vector.shape_cast %19 : vector<1x16x128xbf16> to vector<16x128xbf16>
    %21 = arith.extf %20 : vector<16x128xbf16> to vector<16x128xf32>
    %22 = vector.broadcast %18 : f32 to vector<16x128xf32>
    %23 = arith.mulf %22, %21 : vector<16x128xf32>
    %24 = arith.addf %17, %23 : vector<16x128xf32>
    %c2 = arith.constant 2 : index
    %25 = memref.load %arg1[%c2] : memref<8xf32, #tpu.memory_space<smem>>
    %c2_13 = arith.constant 2 : index
    %c0_14 = arith.constant 0 : index
    %c0_15 = arith.constant 0 : index
    %26 = vector.load %arg5[%c2_13, %c0_14, %c0_15] : memref<8x16x128xbf16, #tpu.memory_space<vmem>>, vector<1x16x128xbf16>
    %27 = vector.shape_cast %26 : vector<1x16x128xbf16> to vector<16x128xbf16>
    %28 = arith.extf %27 : vector<16x128xbf16> to vector<16x128xf32>
    %29 = vector.broadcast %25 : f32 to vector<16x128xf32>
    %30 = arith.mulf %29, %28 : vector<16x128xf32>
    %31 = arith.addf %24, %30 : vector<16x128xf32>
    %c3 = arith.constant 3 : index
    %32 = memref.load %arg1[%c3] : memref<8xf32, #tpu.memory_space<smem>>
    %c3_16 = arith.constant 3 : index
    %c0_17 = arith.constant 0 : index
    %c0_18 = arith.constant 0 : index
    %33 = vector.load %arg5[%c3_16, %c0_17, %c0_18] : memref<8x16x128xbf16, #tpu.memory_space<vmem>>, vector<1x16x128xbf16>
    %34 = vector.shape_cast %33 : vector<1x16x128xbf16> to vector<16x128xbf16>
    %35 = arith.extf %34 : vector<16x128xbf16> to vector<16x128xf32>
    %36 = vector.broadcast %32 : f32 to vector<16x128xf32>
    %37 = arith.mulf %36, %35 : vector<16x128xf32>
    %38 = arith.addf %31, %37 : vector<16x128xf32>
    %c4 = arith.constant 4 : index
    %39 = memref.load %arg1[%c4] : memref<8xf32, #tpu.memory_space<smem>>
    %c4_19 = arith.constant 4 : index
    %c0_20 = arith.constant 0 : index
    %c0_21 = arith.constant 0 : index
    %40 = vector.load %arg5[%c4_19, %c0_20, %c0_21] : memref<8x16x128xbf16, #tpu.memory_space<vmem>>, vector<1x16x128xbf16>
    %41 = vector.shape_cast %40 : vector<1x16x128xbf16> to vector<16x128xbf16>
    %42 = arith.extf %41 : vector<16x128xbf16> to vector<16x128xf32>
    %43 = vector.broadcast %39 : f32 to vector<16x128xf32>
    %44 = arith.mulf %43, %42 : vector<16x128xf32>
    %45 = arith.addf %38, %44 : vector<16x128xf32>
    %c5 = arith.constant 5 : index
    %46 = memref.load %arg1[%c5] : memref<8xf32, #tpu.memory_space<smem>>
    %c5_22 = arith.constant 5 : index
    %c0_23 = arith.constant 0 : index
    %c0_24 = arith.constant 0 : index
    %47 = vector.load %arg5[%c5_22, %c0_23, %c0_24] : memref<8x16x128xbf16, #tpu.memory_space<vmem>>, vector<1x16x128xbf16>
    %48 = vector.shape_cast %47 : vector<1x16x128xbf16> to vector<16x128xbf16>
    %49 = arith.extf %48 : vector<16x128xbf16> to vector<16x128xf32>
    %50 = vector.broadcast %46 : f32 to vector<16x128xf32>
    %51 = arith.mulf %50, %49 : vector<16x128xf32>
    %52 = arith.addf %45, %51 : vector<16x128xf32>
    %c6 = arith.constant 6 : index
    %53 = memref.load %arg1[%c6] : memref<8xf32, #tpu.memory_space<smem>>
    %c6_25 = arith.constant 6 : index
    %c0_26 = arith.constant 0 : index
    %c0_27 = arith.constant 0 : index
    %54 = vector.load %arg5[%c6_25, %c0_26, %c0_27] : memref<8x16x128xbf16, #tpu.memory_space<vmem>>, vector<1x16x128xbf16>
    %55 = vector.shape_cast %54 : vector<1x16x128xbf16> to vector<16x128xbf16>
    %56 = arith.extf %55 : vector<16x128xbf16> to vector<16x128xf32>
    %57 = vector.broadcast %53 : f32 to vector<16x128xf32>
    %58 = arith.mulf %57, %56 : vector<16x128xf32>
    %59 = arith.addf %52, %58 : vector<16x128xf32>
    %c7 = arith.constant 7 : index
    %60 = memref.load %arg1[%c7] : memref<8xf32, #tpu.memory_space<smem>>
    %c7_28 = arith.constant 7 : index
    %c0_29 = arith.constant 0 : index
    %c0_30 = arith.constant 0 : index
    %61 = vector.load %arg5[%c7_28, %c0_29, %c0_30] : memref<8x16x128xbf16, #tpu.memory_space<vmem>>, vector<1x16x128xbf16>
    %62 = vector.shape_cast %61 : vector<1x16x128xbf16> to vector<16x128xbf16>
    %63 = arith.extf %62 : vector<16x128xbf16> to vector<16x128xf32>
    %64 = vector.broadcast %60 : f32 to vector<16x128xf32>
    %65 = arith.mulf %64, %63 : vector<16x128xf32>
    %66 = arith.addf %59, %65 : vector<16x128xf32>
    %67 = arith.addf %11, %66 : vector<16x128xf32>
    %c0_31 = arith.constant 0 : index
    %c0_32 = arith.constant 0 : index
    %68 = vector.load %arg6[%c0_31, %c0_32] : memref<16x128xf32, #tpu.memory_space<vmem>>, vector<16x128xf32>
    tpu.vector_store %arg6[%c0_31, %c0_32], %67 {strides = array<i32>} : memref<16x128xf32, #tpu.memory_space<vmem>>, vector<16x128xf32>,
    return
  }
  func.func @transform_0(%arg0: i32) -> i32 {
    %c0_i32 = arith.constant 0 : i32
    %c0_i32_0 = arith.constant 0 : i32
    return %c0_i32 : i32
  }
  func.func @transform_1(%arg0: i32) -> (i32, i32) {
    %c0_i32 = arith.constant 0 : i32
    %c0_i32_0 = arith.constant 0 : i32
    return %arg0, %c0_i32 : i32, i32
  }
  func.func @transform_2(%arg0: i32) -> (i32, i32) {
    %c0_i32 = arith.constant 0 : i32
    %c0_i32_0 = arith.constant 0 : i32
    return %arg0, %c0_i32 : i32, i32
  }
  func.func @transform_3(%arg0: i32) -> (i32, i32) {
    %c0_i32 = arith.constant 0 : i32
    %c0_i32_0 = arith.constant 0 : i32
    return %arg0, %c0_i32 : i32, i32
  }
  func.func @transform_4(%arg0: i32) -> (i32, i32, i32) {
    %c0_i32 = arith.constant 0 : i32
    %c0_i32_0 = arith.constant 0 : i32
    %c0_i32_1 = arith.constant 0 : i32
    return %c0_i32, %arg0, %c0_i32_0 : i32, i32, i32
  }
  func.func @transform_5(%arg0: i32) -> (i32, i32) {
    %c0_i32 = arith.constant 0 : i32
    %c0_i32_0 = arith.constant 0 : i32
    return %arg0, %c0_i32 : i32, i32
  }
}

</mosaic_0001>

<llo_original>
// kernel: tpu_custom_call.1
$region0: #{tpu_custom_call.1}
  #allocation0 [shape = 'u32[]', space=smem, size = 0x4, offset = 0x4, fixed_abs, tag = 'smem constant byte address 0x4 - core index']
  #allocation1 [shape = 'u32[72,128]{1,0:T(1,128)}', space=vmem, size = 0x9000, scoped, tag = 'internal scratch']
  #allocation13 [shape = 's32[]', space=sflag, size = 0x4, offset = 0, fixed_abs, tag = 'sflag constant byte address 0x0 - dummy sync flag']
  %s0 = inlined_call_operand.hbm [shape: f32[8], index: 0, kind: input, shape index: {}]
  %s1 = inlined_call_operand.hbm [shape: f32[32,128], index: 1, kind: input, shape index: {}]
  %s2 = inlined_call_operand.hbm [shape: f32[32,128], index: 2, kind: input, shape index: {}]
  %s3 = inlined_call_operand.hbm [shape: f32[32,128], index: 3, kind: input, shape index: {}]
  %s4 = inlined_call_operand.hbm [shape: bf16[8,32,128], index: 4, kind: input, shape index: {}]
  %s5 = inlined_call_operand.hbm [shape: f32[32,128], index: 5, kind: output, shape index: {}]
  %s6 = sld [smem:[#allocation0]]
  $region73: #{tpu_custom_call.1} parent=0
    _
  %s8 = ssub.s32 1, %s6
  %s9 = scalar_select 0, %s8, %s6
  $region1: #{tpu_custom_call.1} parent=0
    #allocation2 [shape = 'u8[512]{0}', space=smem, size = 0x200, scoped, tag = 'input window, operand 0, single buffered']
    #allocation3 [shape = 's32[2]{0}', space=sflag, size = 0x8, scoped, tag = 'scoped memory for tpu_custom_call.1']
    #allocation4 [shape = 's32[2]{0}', space=sflag, size = 0x8, scoped, tag = 'scoped memory for tpu_custom_call.1']
    #allocation5 [shape = 's32[2]{0}', space=sflag, size = 0x8, scoped, tag = 'scoped memory for tpu_custom_call.1']
    #allocation6 [shape = 'u8[16384]{0}', space=vmem, size = 0x4000, scoped, tag = 'input window, operand 1']
    #allocation7 [shape = 'u8[16384]{0}', space=vmem, size = 0x4000, scoped, tag = 'input window, operand 2']
    #allocation8 [shape = 's32[2]{0}', space=sflag, size = 0x8, scoped, tag = 'scoped memory for tpu_custom_call.1']
    #allocation9 [shape = 'u8[16384]{0}', space=vmem, size = 0x4000, scoped, tag = 'input window, operand 3']
    #allocation10 [shape = 'u8[65536]{0}', space=vmem, size = 0x10000, scoped, tag = 'input window, operand 4']
    #allocation11 [shape = 's32[2]{0}', space=sflag, size = 0x8, scoped, tag = 'scoped memory for tpu_custom_call.1']
    #allocation12 [shape = 'u8[16384]{0}', space=vmem, size = 0x4000, scoped, tag = 'output window, operand 0']
    %10 = vsyncpa [#allocation5], 0
    %11 = vsyncpa [#allocation3], 0
    %s12 = scalar_lea.sflag [#allocation3], 1
    %13 = vsyncpa %s12, 0
    %14 = vsyncpa [#allocation8], 0
    %s15 = scalar_lea.sflag [#allocation8], 1
    %16 = vsyncpa %s15, 0
    %17 = vsyncpa [#allocation11], 0
    %s18 = scalar_lea.sflag [#allocation11], 1
    %19 = vsyncpa %s18, 0
    %20 = vsyncpa [#allocation4], 0
    %s21 = scalar_lea.sflag [#allocation4], 1
    %22 = vsyncpa %s21, 0
    loop: start=0, step=1, limit=4
    $region2: #{tpu_custom_call.1} parent=1 // loop_pre_header
      _
    $region3: #{tpu_custom_call.1} parent=1 // loop_header
      %s24 = sphi 0, %s28
      %p25 = scmp.ge.s32.totalorder %s24, 4
      %s32 = sphi 0, %s32
      %s34 = sphi 0, %s32
      %s35 = sphi 0, %s34
      %s49 = sphi 0, %s35
      %s55 = sphi 0, %s57
      %s58 = sphi 0, %s55
      %s59 = sphi 0, %s58
      %s75 = sphi 0, %s59
      %s81 = sphi 0, %s83
      %s84 = sphi 0, %s81
      %s85 = sphi 0, %s84
      %s101 = sphi 0, %s85
      %s107 = sphi 0, %s109
      %s110 = sphi 0, %s107
      %s111 = sphi 0, %s110
      %s127 = sphi 0, %s111
      %s133 = sphi 0, %s135
      %s136 = sphi 0, %s133
      %s137 = sphi 0, %s136
      %s153 = sphi 0, %s137
      %s159 = sphi 0, %s161
      %s162 = sphi 0, %s159
      %s163 = sphi 0, %s162
      %s179 = sphi 0, %s163
    $region4: #{tpu_custom_call.1} parent=1 // loop_header_branch
      %27 = sbr.rel (%p25) target = $region8
    $region5: #{tpu_custom_call.1} parent=1 // loop_body
      %s29 = ssub.s32 %s24, 1
      %s30 = ssub.s32 %s24, 2
      %s31 = sadd.s32 %s24, 1
      %s33 = sadd.s32 %s32, 1
      %p36 = scmp.eq.s32.totalorder %s24, 1
      %p37 = scmp.ne.s32.totalorder %s32, %s34
      %p38 = scmp.eq.s32.totalorder %s24, 0
      %p39 = por %p37, %p38
      %p40 = scmp.ne.s32.totalorder %s32, %s34
      %p41 = scmp.eq.s32.totalorder %s29, 1
      %p42 = por %p40, %p41
      %p43 = scmp.ne.s32.totalorder %s34, %s35
      %p44 = scmp.eq.s32.totalorder %s29, 0
      %p45 = por %p43, %p44
      %p46 = scmp.ne.s32.totalorder %s34, %s35
      %p47 = scmp.eq.s32.totalorder %s30, 1
      %p48 = por %p46, %p47
      %p50 = scmp.ne.s32.totalorder %s35, %s49
      %p51 = scmp.eq.s32.totalorder %s30, 0
      %p52 = por %p50, %p51
      %s53 = ssub.s32 %s24, %s31
      %p54 = scmp.eq.s32.totalorder %s53, 0
      %s56 = sadd.s32 %s55, 1
      %s57 = scalar_select %p54, %s55, %s56
      %p60 = pneg %p54
      %p61 = scmp.eq.s32.totalorder %s24, 1
      %p62 = por %p60, %p61
      %p63 = scmp.ne.s32.totalorder %s55, %s58
      %p64 = scmp.eq.s32.totalorder %s24, 0
      %p65 = por %p63, %p64
      %p66 = scmp.ne.s32.totalorder %s55, %s58
      %p67 = scmp.eq.s32.totalorder %s29, 1
      %p68 = por %p66, %p67
      %p69 = scmp.ne.s32.totalorder %s58, %s59
      %p70 = scmp.eq.s32.totalorder %s29, 0
      %p71 = por %p69, %p70
      %p72 = scmp.ne.s32.totalorder %s58, %s59
      %p73 = scmp.eq.s32.totalorder %s30, 1
      %p74 = por %p72, %p73
      %p76 = scmp.ne.s32.totalorder %s59, %s75
      %p77 = scmp.eq.s32.totalorder %s30, 0
      %p78 = por %p76, %p77
      %s79 = ssub.s32 %s24, %s31
      %p80 = scmp.eq.s32.totalorder %s79, 0
      %s82 = sadd.s32 %s81, 1
      %s83 = scalar_select %p80, %s81, %s82
      %p86 = pneg %p80
      %p87 = scmp.eq.s32.totalorder %s24, 1
      %p88 = por %p86, %p87
      %p89 = scmp.ne.s32.totalorder %s81, %s84
      %p90 = scmp.eq.s32.totalorder %s24, 0
      %p91 = por %p89, %p90
      %p92 = scmp.ne.s32.totalorder %s81, %s84
      %p93 = scmp.eq.s32.totalorder %s29, 1
      %p94 = por %p92, %p93
      %p95 = scmp.ne.s32.totalorder %s84, %s85
      %p96 = scmp.eq.s32.totalorder %s29, 0
      %p97 = por %p95, %p96
      %p98 = scmp.ne.s32.totalorder %s84, %s85
      %p99 = scmp.eq.s32.totalorder %s30, 1
      %p100 = por %p98, %p99
      %p102 = scmp.ne.s32.totalorder %s85, %s101
      %p103 = scmp.eq.s32.totalorder %s30, 0
      %p104 = por %p102, %p103
      %s105 = ssub.s32 %s24, %s31
      %p106 = scmp.eq.s32.totalorder %s105, 0
      %s108 = sadd.s32 %s107, 1
      %s109 = scalar_select %p106, %s107, %s108
      %p112 = pneg %p106
      %p113 = scmp.eq.s32.totalorder %s24, 1
      %p114 = por %p112, %p113
      %p115 = scmp.ne.s32.totalorder %s107, %s110
      %p116 = scmp.eq.s32.totalorder %s24, 0
      %p117 = por %p115, %p116
      %p118 = scmp.ne.s32.totalorder %s107, %s110
      %p119 = scmp.eq.s32.totalorder %s29, 1
      %p120 = por %p118, %p119
      %p121 = scmp.ne.s32.totalorder %s110, %s111
      %p122 = scmp.eq.s32.totalorder %s29, 0
      %p123 = por %p121, %p122
      %p124 = scmp.ne.s32.totalorder %s110, %s111
      %p125 = scmp.eq.s32.totalorder %s30, 1
      %p126 = por %p124, %p125
      %p128 = scmp.ne.s32.totalorder %s111, %s127
      %p129 = scmp.eq.s32.totalorder %s30, 0
      %p130 = por %p128, %p129
      %s131 = ssub.s32 %s24, %s31
      %p132 = scmp.eq.s32.totalorder %s131, 0
      %s134 = sadd.s32 %s133, 1
      %s135 = scalar_select %p132, %s133, %s134
      %p138 = pneg %p132
      %p139 = scmp.eq.s32.totalorder %s24, 1
      %p140 = por %p138, %p139
      %p141 = scmp.ne.s32.totalorder %s133, %s136
      %p142 = scmp.eq.s32.totalorder %s24, 0
      %p143 = por %p141, %p142
      %p144 = scmp.ne.s32.totalorder %s133, %s136
      %p145 = scmp.eq.s32.totalorder %s29, 1
      %p146 = por %p144, %p145
      %p147 = scmp.ne.s32.totalorder %s136, %s137
      %p148 = scmp.eq.s32.totalorder %s29, 0
      %p149 = por %p147, %p148
      %p150 = scmp.ne.s32.totalorder %s136, %s137
      %p151 = scmp.eq.s32.totalorder %s30, 1
      %p152 = por %p150, %p151
      %p154 = scmp.ne.s32.totalorder %s137, %s153
      %p155 = scmp.eq.s32.totalorder %s30, 0
      %p156 = por %p154, %p155
      %s157 = ssub.s32 %s24, %s31
      %p158 = scmp.eq.s32.totalorder %s157, 0
      %s160 = sadd.s32 %s159, 1
      %s161 = scalar_select %p158, %s159, %s160
      %p164 = pneg %p158
      %p165 = scmp.eq.s32.totalorder %s24, 1
      %p166 = por %p164, %p165
      %p167 = scmp.ne.s32.totalorder %s159, %s162
      %p168 = scmp.eq.s32.totalorder %s24, 0
      %p169 = por %p167, %p168
      %p170 = scmp.ne.s32.totalorder %s159, %s162
      %p171 = scmp.eq.s32.totalorder %s29, 1
      %p172 = por %p170, %p171
      %p173 = scmp.ne.s32.totalorder %s162, %s163
      %p174 = scmp.eq.s32.totalorder %s29, 0
      %p175 = por %p173, %p174
      %p176 = scmp.ne.s32.totalorder %s162, %s163
      %p177 = scmp.eq.s32.totalorder %s30, 1
      %p178 = por %p176, %p177
      %p180 = scmp.ne.s32.totalorder %s163, %s179
      %p181 = scmp.eq.s32.totalorder %s30, 0
      %p182 = por %p180, %p181
      %p183 = scmp.le.s32.totalorder 1, %s24
      %p184 = scmp.lt.s32.totalorder %s24, 3
      %p185 = pnand %p183, %p184
      %p186 = pneg %p185
      // Predicated region
      $region9: #{tpu_custom_call.1} parent=5 // pred_check
        _
      $region10: #{tpu_custom_call.1} parent=5 // pred_check_branch
        %188 = sbr.rel (%p185) target = $region12
      $region11: #{tpu_custom_call.1} parent=5 // pred_region
        %s189 = ssub.s32 %s24, 1
        // Predicated region
        $region13: #{tpu_custom_call.1} parent=11 // pred_check
          %p190 = pneg %p45
        $region14: #{tpu_custom_call.1} parent=11 // pred_check_branch
          %192 = sbr.rel (%p190) target = $region16
        $region15: #{tpu_custom_call.1} parent=11 // pred_region
          %194 = vsyncadd [#allocation5], 0
          %s196 = sshll.u32 %s0, 4
          %s197 = int_to_ptr.hbm [resolvable:$true] %s196
          %199 = dma.hbm_to_smem %s197, 16, [#allocation2], [#allocation5]
        $region16: #{tpu_custom_call.1} parent=11 // pred_fallthru
          _
      $region12: #{tpu_custom_call.1} parent=5 // pred_fallthru
        _
      %p200 = scmp.lt.s32.totalorder %s24, 2
      // Predicated region
      $region17: #{tpu_custom_call.1} parent=5 // pred_check
        %p201 = pneg %p200
      $region18: #{tpu_custom_call.1} parent=5 // pred_check_branch
        %203 = sbr.rel (%p201) target = $region20
      $region19: #{tpu_custom_call.1} parent=5 // pred_region
        // Predicated region
        $region21: #{tpu_custom_call.1} parent=19 // pred_check
          %p204 = pneg %p65
        $region22: #{tpu_custom_call.1} parent=19 // pred_check_branch
          %206 = sbr.rel (%p204) target = $region24
        $region23: #{tpu_custom_call.1} parent=19 // pred_region
          %s207 = sand.u32 %s55, 1
          %s208 = scalar_lea.sflag [#allocation3], %s207
          %s209 = sand.u32 %s55, 1
          %s210 = smul.addr %s209, 16
          %s211 = scalar_lea.vmem [#allocation6], %s210
          %s212 = smul.u32 2, %s24
          %214 = vsyncadd %s208, 0
          %s215 = smul.addr %s212, 8
          %s216 = scalar_lea.hbm %s1, %s215
          %s217 = sshll.u32 %s216, 4
          %s218 = int_to_ptr.hbm [resolvable:$true] %s217
          %s219 = sshll.u32 %s211, 4
          %s220 = int_to_ptr.vmem [resolvable:$true] %s219
          %225 = dma.hbm_to_vmem [thread:$0]  %s218, 256, %s220, %s208, 128, 128, 8
        $region24: #{tpu_custom_call.1} parent=19 // pred_fallthru
          _
        // Predicated region
        $region25: #{tpu_custom_call.1} parent=19 // pred_check
          %p226 = pneg %p91
        $region26: #{tpu_custom_call.1} parent=19 // pred_check_branch
          %228 = sbr.rel (%p226) target = $region28
        $region27: #{tpu_custom_call.1} parent=19 // pred_region
          %s229 = sand.u32 %s24, 1
          %s230 = scalar_lea.sflag [#allocation8], %s229
          %s231 = sand.u32 %s81, 1
          %s232 = smul.addr %s231, 16
          %s233 = scalar_lea.vmem [#allocation7], %s232
          %s234 = smul.u32 2, %s24
          %236 = vsyncadd %s230, 0
          %s237 = smul.addr %s234, 8
          %s238 = scalar_lea.hbm %s2, %s237
          %s239 = sshll.u32 %s238, 4
          %s240 = int_to_ptr.hbm [resolvable:$true] %s239
          %s241 = sshll.u32 %s233, 4
          %s242 = int_to_ptr.vmem [resolvable:$true] %s241
          %247 = dma.hbm_to_vmem [thread:$0]  %s240, 256, %s242, %s230, 128, 128, 8
        $region28: #{tpu_custom_call.1} parent=19 // pred_fallthru
          _
        // Predicated region
        $region29: #{tpu_custom_call.1} parent=19 // pred_check
          %p248 = pneg %p117
        $region30: #{tpu_custom_call.1} parent=19 // pred_check_branch
          %250 = sbr.rel (%p248) target = $region32
        $region31: #{tpu_custom_call.1} parent=19 // pred_region
          %s251 = sand.u32 %s24, 1
          %s252 = scalar_lea.sflag [#allocation8], %s251
          %s253 = sand.u32 %s107, 1
          %s254 = smul.addr %s253, 16
          %s255 = scalar_lea.vmem [#allocation9], %s254
          %s256 = smul.u32 2, %s24
          %258 = vsyncadd %s252, 0
          %s259 = smul.addr %s256, 8
          %s260 = scalar_lea.hbm %s3, %s259
          %s261 = sshll.u32 %s260, 4
          %s262 = int_to_ptr.hbm [resolvable:$true] %s261
          %s263 = sshll.u32 %s255, 4
          %s264 = int_to_ptr.vmem [resolvable:$true] %s263
          %269 = dma.hbm_to_vmem [thread:$0]  %s262, 256, %s264, %s252, 128, 128, 8
        $region32: #{tpu_custom_call.1} parent=19 // pred_fallthru
          _
        // Predicated region
        $region33: #{tpu_custom_call.1} parent=19 // pred_check
          %p270 = pneg %p143
        $region34: #{tpu_custom_call.1} parent=19 // pred_check_branch
          %272 = sbr.rel (%p270) target = $region36
        $region35: #{tpu_custom_call.1} parent=19 // pred_region
          #allocation14 [shape = 'u32[6]{0}', space=smem, size = 0x18, scoped, tag = 'DMA stride descriptor']
          %s273 = sand.u32 %s133, 1
          %s274 = scalar_lea.sflag [#allocation11], %s273
          %s275 = sand.u32 %s133, 1
          %s276 = smul.addr %s275, 64
          %s277 = scalar_lea.vmem [#allocation10], %s276
          %s278 = smul.u32 2, %s24
          %280 = vsyncadd %s274, 0
          %s281 = smul.addr %s278, 4
          %s282 = scalar_lea.hbm %s4, %s281
          %s284 = sshll.u32 1, 14
          %s285 = sxor.u32 4294967295, %s284
          %s287 = sld [smem:[#allocation0]]
          %s288 = sadd.s32 2, %s287
          %s290 = sshll.u32 7, 26
          %s291 = sxor.u32 4294967295, %s290
          %s292 = sand.u32 0, %s291
          %s293 = sshll.u32 %s288, 26
          %s294 = sor.u32 %s292, %s293
          %s295 = sshll.u32 %s282, 4
          %s296 = int_to_ptr.hbm [resolvable:$true] %s295
          %s297 = sshll.u32 %s277, 4
          %s298 = int_to_ptr.vmem [resolvable:$true] %s297
          %304 = sst [smem:[#allocation14]] 256
          %s305 = scalar_lea.smem [#allocation14], 1
          %306 = sst [smem:[%s305]] 128
          %s307 = scalar_lea.smem [#allocation14], 2
          %308 = sst [smem:[%s307]] 2
          %s309 = scalar_lea.smem [#allocation14], 3
          %310 = sst [smem:[%s309]] 64
          %s311 = scalar_lea.smem [#allocation14], 4
          %312 = sst [smem:[%s311]] 64
          %s313 = scalar_lea.smem [#allocation14], 5
          %314 = sst [smem:[%s313]] 4
          %316 = dma.general %s296, 1024, %s298, %s274, [#allocation13], [#allocation14], %s294, 0
        $region36: #{tpu_custom_call.1} parent=19 // pred_fallthru
          _
      $region20: #{tpu_custom_call.1} parent=5 // pred_fallthru
        _
      %p317 = scmp.le.s32.totalorder 1, %s24
      %p318 = scmp.lt.s32.totalorder %s24, 3
      %p319 = pnand %p317, %p318
      %p320 = pneg %p319
      // Predicated region
      $region37: #{tpu_custom_call.1} parent=5 // pred_check
        _
      $region38: #{tpu_custom_call.1} parent=5 // pred_check_branch
        %322 = sbr.rel (%p319) target = $region40
      $region39: #{tpu_custom_call.1} parent=5 // pred_region
        %s323 = ssub.s32 %s24, 1
        // Predicated region
        $region41: #{tpu_custom_call.1} parent=39 // pred_check
          %p324 = pneg %p45
        $region42: #{tpu_custom_call.1} parent=39 // pred_check_branch
          %326 = sbr.rel (%p324) target = $region44
        $region43: #{tpu_custom_call.1} parent=39 // pred_region
          %328 = dma.done [#allocation5], 16
        $region44: #{tpu_custom_call.1} parent=39 // pred_fallthru
          _
        %s329 = sand.u32 %s58, 1
        %s330 = scalar_lea.sflag [#allocation3], %s329
        %s331 = sand.u32 %s58, 1
        %s332 = smul.addr %s331, 16
        %s333 = scalar_lea.vmem [#allocation6], %s332
        // Predicated region
        $region45: #{tpu_custom_call.1} parent=39 // pred_check
          %p334 = pneg %p71
        $region46: #{tpu_custom_call.1} parent=39 // pred_check_branch
          %336 = sbr.rel (%p334) target = $region48
        $region47: #{tpu_custom_call.1} parent=39 // pred_region
          %338 = dma.done %s330, 256
        $region48: #{tpu_custom_call.1} parent=39 // pred_fallthru
          _
        %s339 = sand.u32 %s29, 1
        %s340 = scalar_lea.sflag [#allocation8], %s339
        %s341 = sand.u32 %s84, 1
        %s342 = smul.addr %s341, 16
        %s343 = scalar_lea.vmem [#allocation7], %s342
        // Predicated region
        $region49: #{tpu_custom_call.1} parent=39 // pred_check
          %p344 = pneg %p97
        $region50: #{tpu_custom_call.1} parent=39 // pred_check_branch
          %346 = sbr.rel (%p344) target = $region52
        $region51: #{tpu_custom_call.1} parent=39 // pred_region
          %348 = dma.done %s340, 256
        $region52: #{tpu_custom_call.1} parent=39 // pred_fallthru
          _
        %s349 = sand.u32 %s29, 1
        %s350 = scalar_lea.sflag [#allocation8], %s349
        %s351 = sand.u32 %s110, 1
        %s352 = smul.addr %s351, 16
        %s353 = scalar_lea.vmem [#allocation9], %s352
        // Predicated region
        $region53: #{tpu_custom_call.1} parent=39 // pred_check
          %p354 = pneg %p123
        $region54: #{tpu_custom_call.1} parent=39 // pred_check_branch
          %356 = sbr.rel (%p354) target = $region56
        $region55: #{tpu_custom_call.1} parent=39 // pred_region
          %358 = dma.done %s350, 256
        $region56: #{tpu_custom_call.1} parent=39 // pred_fallthru
          _
        %s359 = sand.u32 %s136, 1
        %s360 = scalar_lea.sflag [#allocation11], %s359
        %s361 = sand.u32 %s136, 1
        %s362 = smul.addr %s361, 64
        %s363 = scalar_lea.vmem [#allocation10], %s362
        // Predicated region
        $region57: #{tpu_custom_call.1} parent=39 // pred_check
          %p364 = pneg %p149
        $region58: #{tpu_custom_call.1} parent=39 // pred_check_branch
          %366 = sbr.rel (%p364) target = $region60
        $region59: #{tpu_custom_call.1} parent=39 // pred_region
          %368 = dma.done %s360, 1024
        $region60: #{tpu_custom_call.1} parent=39 // pred_fallthru
          _
        %369 = sfence
        %p370 = pneg %p45
        %p371 = pneg %p42
        %s372 = sand.u32 %s58, 1
        %s373 = scalar_lea.sflag [#allocation3], %s372
        %s374 = sand.u32 %s58, 1
        %s375 = smul.addr %s374, 16
        %s376 = scalar_lea.vmem [#allocation6], %s375
        %p377 = pneg %p71
        %p378 = pneg %p68
        %s379 = sand.u32 %s29, 1
        %s380 = scalar_lea.sflag [#allocation8], %s379
        %s381 = sand.u32 %s84, 1
        %s382 = smul.addr %s381, 16
        %s383 = scalar_lea.vmem [#allocation7], %s382
        %p384 = pneg %p97
        %p385 = pneg %p94
        %s386 = sand.u32 %s29, 1
        %s387 = scalar_lea.sflag [#allocation8], %s386
        %s388 = sand.u32 %s110, 1
        %s389 = smul.addr %s388, 16
        %s390 = scalar_lea.vmem [#allocation9], %s389
        %p391 = pneg %p123
        %p392 = pneg %p120
        %s393 = sand.u32 %s136, 1
        %s394 = scalar_lea.sflag [#allocation11], %s393
        %s395 = sand.u32 %s136, 1
        %s396 = smul.addr %s395, 64
        %s397 = scalar_lea.vmem [#allocation10], %s396
        %p398 = pneg %p149
        %p399 = pneg %p146
        %p400 = pneg %p175
        %p401 = pneg %p172
        %s402 = sand.u32 %s162, 1
        %s403 = scalar_lea.sflag [#allocation4], %s402
        %s404 = sand.u32 %s162, 1
        %s405 = smul.addr %s404, 16
        %s406 = scalar_lea.vmem [#allocation12], %s405
        %s407 = smul.u32 2, %s29
        %s408 = smul.u32 2, %s29
        %s409 = smul.u32 2, %s29
        %s410 = smul.u32 2, %s29
        %s411 = smul.u32 2, %s29
        %v412 = vld [vmem:[%s333] sm:$0xff]
        %v413 = vld [vmem:[%s333 + $0x8] sm:$0xff]
        %v414 = vld [vmem:[%s343] sm:$0xff]
        %v415 = vld [vmem:[%s343 + $0x8] sm:$0xff]
        %v416 = vmul.f32 %v412, %v412
        %v417 = vmul.f32 %v413, %v413
        %v418 = vsub.f32 %v414, %v416
        %v419 = vsub.f32 %v415, %v417
        %v420 = vmax.f32 %v418, 1e-30
        %v421 = vmax.f32 %v419, 1e-30
        %v422 = vrsqrt.pop %v420
        %v423 = vmul.f32 %v422, %v420
        %v424 = vmul.f32 %v423, %v422
        %v425 = vmul.f32 0.5, %v424
        %v426 = vsub.f32 1.5, %v425
        %v427 = vmul.f32 %v422, %v426
        %v428 = vmul.f32 %v420, %v427
        %vm429 = vcmp.eq.f32.partialorder %v420, inf
        %v430 = vsel %vm429, %v420, %v428
        %vm431 = vcmp.eq.f32.partialorder %v420, 0.0
        %v432 = vand.u32 %v420, 2147483648
        %v433 = vsel %vm431, %v432, %v430
        %v434 = vrsqrt.pop %v421
        %v435 = vmul.f32 %v434, %v421
        %v436 = vmul.f32 %v435, %v434
        %v437 = vmul.f32 0.5, %v436
        %v438 = vsub.f32 1.5, %v437
        %v439 = vmul.f32 %v434, %v438
        %v440 = vmul.f32 %v421, %v439
        %vm441 = vcmp.eq.f32.partialorder %v421, inf
        %v442 = vsel %vm441, %v421, %v440
        %vm443 = vcmp.eq.f32.partialorder %v421, 0.0
        %v444 = vand.u32 %v421, 2147483648
        %v445 = vsel %vm443, %v444, %v442
        %v446 = vld [vmem:[%s353] sm:$0xff]
        %v447 = vld [vmem:[%s353 + $0x8] sm:$0xff]
        %v448 = vmul.f32 %v433, %v446
        %v449 = vmul.f32 %v445, %v447
        %v450 = vadd.f32 %v412, %v448
        %v451 = vadd.f32 %v413, %v449
        %s452 = sld [smem:[#allocation2]]
        %v453 = vld [vmem:[%s363] sm:$0xf]
        %v454 = vld [vmem:[%s363 + $0x4] sm:$0xf]
        %v455 = vunpack.c.l.bf16 %v453
        %v456 = vunpack.c.l.bf16 %v454
        %v457 = vstv %s452
        %v458 = vmul.f32 %v457, %v455
        %v459 = vmul.f32 %v457, %v456
        %s460 = sld [smem:[#allocation2 + $0x1]]
        %s461 = scalar_lea.vmem %s363, 8 [#allocation10]
        %v462 = vld [vmem:[%s461] sm:$0xf]
        %v463 = vld [vmem:[%s461 + $0x4] sm:$0xf]
        %v464 = vunpack.c.l.bf16 %v462
        %v465 = vunpack.c.l.bf16 %v463
        %v466 = vstv %s460
        %v467 = vmul.f32 %v466, %v464
        %v468 = vmul.f32 %v466, %v465
        %v469 = vadd.f32 %v458, %v467
        %v470 = vadd.f32 %v459, %v468
        %s471 = sld [smem:[#allocation2 + $0x2]]
        %s472 = scalar_lea.vmem %s363, 16 [#allocation10]
        %v473 = vld [vmem:[%s472] sm:$0xf]
        %v474 = vld [vmem:[%s472 + $0x4] sm:$0xf]
        %v475 = vunpack.c.l.bf16 %v473
        %v476 = vunpack.c.l.bf16 %v474
        %v477 = vstv %s471
        %v478 = vmul.f32 %v477, %v475
        %v479 = vmul.f32 %v477, %v476
        %v480 = vadd.f32 %v469, %v478
        %v481 = vadd.f32 %v470, %v479
        %s482 = sld [smem:[#allocation2 + $0x3]]
        %s483 = scalar_lea.vmem %s363, 24 [#allocation10]
        %v484 = vld [vmem:[%s483] sm:$0xf]
        %v485 = vld [vmem:[%s483 + $0x4] sm:$0xf]
        %v486 = vunpack.c.l.bf16 %v484
        %v487 = vunpack.c.l.bf16 %v485
        %v488 = vstv %s482
        %v489 = vmul.f32 %v488, %v486
        %v490 = vmul.f32 %v488, %v487
        %v491 = vadd.f32 %v480, %v489
        %v492 = vadd.f32 %v481, %v490
        %s493 = sld [smem:[#allocation2 + $0x4]]
        %s494 = scalar_lea.vmem %s363, 32 [#allocation10]
        %v495 = vld [vmem:[%s494] sm:$0xf]
        %v496 = vld [vmem:[%s494 + $0x4] sm:$0xf]
        %v497 = vunpack.c.l.bf16 %v495
        %v498 = vunpack.c.l.bf16 %v496
        %v499 = vstv %s493
        %v500 = vmul.f32 %v499, %v497
        %v501 = vmul.f32 %v499, %v498
        %v502 = vadd.f32 %v491, %v500
        %v503 = vadd.f32 %v492, %v501
        %s504 = sld [smem:[#allocation2 + $0x5]]
        %s505 = scalar_lea.vmem %s363, 40 [#allocation10]
        %v506 = vld [vmem:[%s505] sm:$0xf]
        %v507 = vld [vmem:[%s505 + $0x4] sm:$0xf]
        %v508 = vunpack.c.l.bf16 %v506
        %v509 = vunpack.c.l.bf16 %v507
        %v510 = vstv %s504
        %v511 = vmul.f32 %v510, %v508
        %v512 = vmul.f32 %v510, %v509
        %v513 = vadd.f32 %v502, %v511
        %v514 = vadd.f32 %v503, %v512
        %s515 = sld [smem:[#allocation2 + $0x6]]
        %s516 = scalar_lea.vmem %s363, 48 [#allocation10]
        %v517 = vld [vmem:[%s516] sm:$0xf]
        %v518 = vld [vmem:[%s516 + $0x4] sm:$0xf]
        %v519 = vunpack.c.l.bf16 %v517
        %v520 = vunpack.c.l.bf16 %v518
        %v521 = vstv %s515
        %v522 = vmul.f32 %v521, %v519
        %v523 = vmul.f32 %v521, %v520
        %v524 = vadd.f32 %v513, %v522
        %v525 = vadd.f32 %v514, %v523
        %s526 = sld [smem:[#allocation2 + $0x7]]
        %s527 = scalar_lea.vmem %s363, 56 [#allocation10]
        %v528 = vld [vmem:[%s527] sm:$0xf]
        %v529 = vld [vmem:[%s527 + $0x4] sm:$0xf]
        %v530 = vunpack.c.l.bf16 %v528
        %v531 = vunpack.c.l.bf16 %v529
        %v532 = vstv %s526
        %v533 = vmul.f32 %v532, %v530
        %v534 = vmul.f32 %v532, %v531
        %v535 = vadd.f32 %v524, %v533
        %v536 = vadd.f32 %v525, %v534
        %v537 = vadd.f32 %v450, %v535
        %v538 = vadd.f32 %v451, %v536
        %539 = vst [vmem:[%s406] sm:$0xff] %v537
        %540 = vst [vmem:[%s406 + $0x8] sm:$0xff] %v538
        %s541 = sand.u32 %s162, 1
        %s542 = scalar_lea.sflag [#allocation4], %s541
        %s543 = sand.u32 %s162, 1
        %s544 = smul.addr %s543, 16
        %s545 = scalar_lea.vmem [#allocation12], %s544
        // Predicated region
        $region61: #{tpu_custom_call.1} parent=39 // pred_check
          %p546 = pneg %p172
        $region62: #{tpu_custom_call.1} parent=39 // pred_check_branch
          %548 = sbr.rel (%p546) target = $region64
        $region63: #{tpu_custom_call.1} parent=39 // pred_region
          %s549 = smul.u32 2, %s29
          %551 = vsyncadd %s542, 0
          %s552 = smul.addr %s549, 8
          %s553 = scalar_lea.hbm %s5, %s552
          %s554 = sshll.u32 %s545, 4
          %s555 = int_to_ptr.vmem [resolvable:$true] %s554
          %s556 = sshll.u32 %s553, 4
          %s557 = int_to_ptr.hbm [resolvable:$true] %s556
          %562 = dma.vmem_to_hbm [thread:$0]  %s555, 256, %s557, %s542, 128, 128, 8
        $region64: #{tpu_custom_call.1} parent=39 // pred_fallthru
          _
      $region40: #{tpu_custom_call.1} parent=5 // pred_fallthru
        _
      %p563 = scmp.le.s32.totalorder 2, %s24
      // Predicated region
      $region65: #{tpu_custom_call.1} parent=5 // pred_check
        %p564 = pneg %p563
      $region66: #{tpu_custom_call.1} parent=5 // pred_check_branch
        %566 = sbr.rel (%p564) target = $region68
      $region67: #{tpu_custom_call.1} parent=5 // pred_region
        %s567 = ssub.s32 %s24, 2
        // Predicated region
        $region69: #{tpu_custom_call.1} parent=67 // pred_check
          %p568 = pneg %p178
        $region70: #{tpu_custom_call.1} parent=67 // pred_check_branch
          %570 = sbr.rel (%p568) target = $region72
        $region71: #{tpu_custom_call.1} parent=67 // pred_region
          %s571 = sand.u32 %s163, 1
          %s572 = scalar_lea.sflag [#allocation4], %s571
          %s573 = sand.u32 %s163, 1
          %s574 = smul.addr %s573, 16
          %s575 = scalar_lea.vmem [#allocation12], %s574
          %577 = dma.done %s572, 256
        $region72: #{tpu_custom_call.1} parent=67 // pred_fallthru
          _
      $region68: #{tpu_custom_call.1} parent=5 // pred_fallthru
        _
    $region6: #{tpu_custom_call.1} parent=1 // loop_footer
      %s28 = sadd.s32 1, %s24
    $region7: #{tpu_custom_call.1} parent=1 // loop_footer_branch
      %23 = sbr.rel target = $region3
    $region8: #{tpu_custom_call.1} parent=1 // loop_exit
      _
    %578 = vsyncpa [#allocation3], 1
    %s579 = scalar_lea.sflag [#allocation3], 1
    %580 = vsyncpa %s579, 1
    %581 = vsyncpa [#allocation8], 1
    %s582 = scalar_lea.sflag [#allocation8], 1
    %583 = vsyncpa %s582, 1
    %584 = vsyncpa [#allocation11], 1
    %s585 = scalar_lea.sflag [#allocation11], 1
    %586 = vsyncpa %s585, 1
    %587 = vsyncpa [#allocation4], 1
    %s588 = scalar_lea.sflag [#allocation4], 1
    %589 = vsyncpa %s588, 1
    %590 = vsyncpa [#allocation5], 1
    %s591 = scalar_lea.sflag [#allocation5], 1
    %592 = vsyncpa %s591, 1

</llo_original>
